<compile_context>
chip_gen: v5e
topology: v5e:2x2
jax: 0.10.0
libtpu: 0.0.40
codegen_flags: <defaults>
</compile_context>

<pallas_src>
import jax
import jax.numpy as jnp
from jax import lax
from jax.experimental import pallas as pl
from jax.experimental.pallas import tpu as pltpu

_TB_CAP = 1024          # max batch-tile rows (f32-safe for v5e's 16 MiB scoped VMEM)
_SPLIT_THRESHOLD = 512  # beyond this, force >=2 grid steps so both v7x TCs run


def _nsp_head_kernel(x_ref, w_ref, b_ref, o_ref):
    # x_ref: (TB, H)  pooled-output tile (lane-dense on H)
    # w_ref: (H, 2)   weight, pre-transposed: K on sublanes, N on lanes
    # b_ref: (1, 2)   bias
    # o_ref: (TB, 2)  NSP scores tile
    acc = lax.dot_general(
        x_ref[...], w_ref[...],
        dimension_numbers=(((1,), (0,)), ((), ())),
        preferred_element_type=jnp.float32,
    )
    o_ref[...] = (acc + b_ref[...].astype(jnp.float32)).astype(o_ref.dtype)


def _pick_batch_tile(B):
    """Batch tile: single block for small B; otherwise an even number of steps
    with tiles that are sublane-aligned and capped at _TB_CAP rows."""
    if B <= _SPLIT_THRESHOLD:
        return B
    n_steps = max(2, 2 * pl.cdiv(B, 2 * _TB_CAP))      # even step count
    return ((pl.cdiv(B, n_steps) + 7) // 8) * 8         # round up to sublane multiple


def bert_only_nsp_head(pooled_output, weight, bias):
    """pooled_output: [B, H]; weight: [2, H]; bias: [2] -> scores [B, 2]."""
    B, H = pooled_output.shape
    N, Hw = weight.shape
    assert Hw == H and bias.shape == (N,)

    # Explicit mixed-precision policy: MXU operands share the activation dtype;
    # accumulation is f32 inside the kernel.  One-time tiny (2 x H) transpose so
    # the RHS is fed with K on sublanes / N on lanes.
    w_t = weight.astype(pooled_output.dtype).T           # (H, N)
    b2 = bias.reshape(1, N).astype(pooled_output.dtype)  # (1, N)

    tb = _pick_batch_tile(B)
    grid = (pl.cdiv(B, tb),)

    return pl.pallas_call(
        _nsp_head_kernel,
        out_shape=jax.ShapeDtypeStruct((B, N), pooled_output.dtype),
        grid_spec=pltpu.PrefetchScalarGridSpec(
            num_scalar_prefetch=0,
            grid=grid,
            in_specs=[
                # x streams along the batch grid axis (double-buffered DMA).
                pl.BlockSpec((tb, H), lambda i: (i, 0)),
                # weight / bias are tiny and resident (same block every step).
                pl.BlockSpec((H, N), lambda i: (0, 0)),
                pl.BlockSpec((1, N), lambda i: (0, 0)),
            ],
            out_specs=pl.BlockSpec((tb, N), lambda i: (i, 0)),
        ),
        compiler_params=pltpu.CompilerParams(
            # Batch tiles are independent -> shard across TensorCores (v7x megacore).
            dimension_semantics=("parallel",),
        ),
    )(pooled_output, w_t, b2)


if __name__ == "__main__":
    # Small config consistent with the module: hidden_size=32, batch=8.
    batch, hidden_size = 8, 32

    key = jax.random.PRNGKey(0)
    k_x, k_w, k_b = jax.random.split(key, 3)

    pooled_output = jax.random.normal(k_x, (batch, hidden_size), dtype=jnp.float32)
    # PyTorch Linear(hidden_size, 2) parameter shapes: weight [2, H], bias [2].
    weight = jax.random.normal(k_w, (2, hidden_size), dtype=jnp.float32) * 0.02
    bias = jax.random.normal(k_b, (2,), dtype=jnp.float32) * 0.02

    out = bert_only_nsp_head(pooled_output, weight, bias)
    out = jax.block_until_ready(out)

    # Reference check in plain JAX.
    ref = pooled_output @ weight.T + bias
    assert out.shape == (batch, 2)
    assert jnp.allclose(out, ref, atol=1e-5, rtol=1e-5)

    print("KERNEL_OK")
</pallas_src>

<mosaic_0001>
module attributes {stable_mosaic.version = 11 : i64} {
  func.func @_nsp_head_kernel(%arg0: i32, %arg1: memref<8x32xf32, #tpu.memory_space<vmem>>, %arg2: memref<32x2xf32, #tpu.memory_space<vmem>>, %arg3: memref<1x2xf32, #tpu.memory_space<vmem>>, %arg4: memref<8x2xf32, #tpu.memory_space<vmem>>) attributes {dimension_semantics = [#tpu.dimension_semantics<parallel>], iteration_bounds = array<i64: 1>, scalar_prefetch = 0 : i64, scratch_operands = 0 : i64, tpu.core_type = #tpu.core_type<tc>, window_params = [{transform_indices = @transform_0, window_bounds = array<i64: 8, 32>}, {pipeline_mode = #tpu.pipeline_mode<synchronous>, transform_indices = @transform_1, window_bounds = array<i64: 32, 2>}, {pipeline_mode = #tpu.pipeline_mode<synchronous>, transform_indices = @transform_2, window_bounds = array<i64: 1, 2>}, {transform_indices = @transform_3, window_bounds = array<i64: 8, 2>}]} {
    %c0 = arith.constant 0 : index
    %c0_0 = arith.constant 0 : index
    %0 = vector.load %arg1[%c0, %c0_0] : memref<8x32xf32, #tpu.memory_space<vmem>>, vector<8x32xf32>
    %c0_1 = arith.constant 0 : index
    %c0_2 = arith.constant 0 : index
    %1 = vector.load %arg2[%c0_1, %c0_2] : memref<32x2xf32, #tpu.memory_space<vmem>>, vector<32x2xf32>
    %cst = arith.constant dense<0.000000e+00> : vector<8x2xf32>
    %2 = tpu.matmul %0, %1, %cst {dimension_numbers = #tpu.dot_dimension_numbers<[1], [0], [0], [1], [0, 0, 1, 1], [], []>} : vector<8x32xf32>, vector<32x2xf32>, vector<8x2xf32> -> vector<8x2xf32>
    %c0_3 = arith.constant 0 : index
    %c0_4 = arith.constant 0 : index
    %3 = vector.load %arg3[%c0_3, %c0_4] : memref<1x2xf32, #tpu.memory_space<vmem>>, vector<1x2xf32>
    %4 = vector.broadcast %3 : vector<1x2xf32> to vector<8x2xf32>
    %5 = arith.addf %2, %4 : vector<8x2xf32>
    %c0_5 = arith.constant 0 : index
    %c0_6 = arith.constant 0 : index
    %6 = vector.load %arg4[%c0_5, %c0_6] : memref<8x2xf32, #tpu.memory_space<vmem>>, vector<8x2xf32>
    tpu.vector_store %arg4[%c0_5, %c0_6], %5 {strides = array<i32>} : memref<8x2xf32, #tpu.memory_space<vmem>>, vector<8x2xf32>,
    return
  }
  func.func @transform_0(%arg0: i32) -> (i32, i32) {
    %c0_i32 = arith.constant 0 : i32
    %c0_i32_0 = arith.constant 0 : i32
    return %arg0, %c0_i32 : i32, i32
  }
  func.func @transform_1(%arg0: i32) -> (i32, i32) {
    %c0_i32 = arith.constant 0 : i32
    %c0_i32_0 = arith.constant 0 : i32
    %c0_i32_1 = arith.constant 0 : i32
    return %c0_i32, %c0_i32_0 : i32, i32
  }
  func.func @transform_2(%arg0: i32) -> (i32, i32) {
    %c0_i32 = arith.constant 0 : i32
    %c0_i32_0 = arith.constant 0 : i32
    %c0_i32_1 = arith.constant 0 : i32
    return %c0_i32, %c0_i32_0 : i32, i32
  }
  func.func @transform_3(%arg0: i32) -> (i32, i32) {
    %c0_i32 = arith.constant 0 : i32
    %c0_i32_0 = arith.constant 0 : i32
    return %arg0, %c0_i32 : i32, i32
  }
}

</mosaic_0001>

<llo_original>
// kernel: tpu_custom_call.1
$region0: #{tpu_custom_call.1}
  #allocation0 [shape = 'u32[]', space=smem, size = 0x4, offset = 0x4, fixed_abs, tag = 'smem constant byte address 0x4 - core index']
  #allocation1 [shape = 'u32[72,128]{1,0:T(1,128)}', space=vmem, size = 0x9000, scoped, tag = 'internal scratch']
  %s0 = inlined_call_operand.vmem [shape: f32[8,32], index: 0, kind: input, shape index: {}]
  %s1 = inlined_call_operand.vmem [shape: f32[32,2], index: 1, kind: input, shape index: {}]
  %s2 = inlined_call_operand.vmem [shape: f32[1,2], index: 2, kind: input, shape index: {}]
  %s3 = inlined_call_operand.vmem [shape: f32[8,2], index: 3, kind: output, shape index: {}]
  %s4 = sld [smem:[#allocation0]]
  $region22: #{tpu_custom_call.1} parent=0
    _
  %s6 = ssub.s32 1, %s4
  %s7 = scalar_select 0, %s6, %s4
  // Predicated region
  $region2: #{tpu_custom_call.1} parent=0 // pred_check
    _
  $region3: #{tpu_custom_call.1} parent=0 // pred_check_branch
    %9 = sbr.rel (0) target = $region5
  $region4: #{tpu_custom_call.1} parent=0 // pred_region
    _
  $region5: #{tpu_custom_call.1} parent=0 // pred_fallthru
    _
  // Predicated region
  $region6: #{tpu_custom_call.1} parent=0 // pred_check
    _
  $region7: #{tpu_custom_call.1} parent=0 // pred_check_branch
    %11 = sbr.rel (0) target = $region9
  $region8: #{tpu_custom_call.1} parent=0 // pred_region
    _
  $region9: #{tpu_custom_call.1} parent=0 // pred_fallthru
    _
  // Predicated region
  $region10: #{tpu_custom_call.1} parent=0 // pred_check
    _
  $region11: #{tpu_custom_call.1} parent=0 // pred_check_branch
    %13 = sbr.rel (0) target = $region13
  $region12: #{tpu_custom_call.1} parent=0 // pred_region
    _
  $region13: #{tpu_custom_call.1} parent=0 // pred_fallthru
    _
  %v14 = vld [vmem:[%s0] sm:$0xff]
  %v15 = vld [vmem:[%s1] sm:$0xff]
  %v16 = vld [vmem:[%s1 + $0x8] sm:$0xff]
  %v17 = vld [vmem:[%s1 + $0x10] sm:$0xff]
  %v18 = vld [vmem:[%s1 + $0x18] sm:$0xff]
  %v19 = vld [vmem:[%s2] sm:$0x1]
  %v21 = vperm.slane %v19, 0
  %vm23 = vcmask 261120
  %v25 = vsel %vm23, %v14, 0
  %27 = vmatpush.msra.mxu0 0.0
  %28 = vmatpush.msra.mxu0 0.0
  %29 = vmatpush.msra.mxu0 0.0
  %30 = vmatpush.msra.mxu0 0.0
  %31 = vmatpush.msra.mxu0 0.0
  %32 = vmatpush.msra.mxu0 0.0
  %33 = vmatpush.msra.mxu0 0.0
  %34 = vmatpush.msra.mxu0 0.0
  %35 = vmatpush.msra.mxu0 0.0
  %36 = vmatpush.msra.mxu0 0.0
  %37 = vmatpush.msra.mxu0 0.0
  %38 = vmatpush.msra.mxu0 0.0
  %39 = vmatpush.msra.mxu0 %v18
  %40 = vmatpush.msra.mxu0 %v17
  %41 = vmatpush.msra.mxu0 %v16
  %42 = vmatpush.msra.mxu0 %v15
  %43 = vmatmul.f32.gmra.mxu0 %v25
  %v44 = vpop.f32.mrf.mxu0
  %v45 = vadd.f32 %v21, %v44
  %46 = vdwg.mxu0
  %vm47 = vcmask 15360
  %48 = vst.msk [vmem:[%s3] sm:$0xff] %vm47, %v45
  // Predicated region
  $region14: #{tpu_custom_call.1} parent=0 // pred_check
    _
  $region15: #{tpu_custom_call.1} parent=0 // pred_check_branch
    %50 = sbr.rel (0) target = $region17
  $region16: #{tpu_custom_call.1} parent=0 // pred_region
    _
  $region17: #{tpu_custom_call.1} parent=0 // pred_fallthru
    _
  // Predicated region
  $region18: #{tpu_custom_call.1} parent=0 // pred_check
    _
  $region19: #{tpu_custom_call.1} parent=0 // pred_check_branch
    %52 = sbr.rel (0) target = $region21
  $region20: #{tpu_custom_call.1} parent=0 // pred_region
    _
  $region21: #{tpu_custom_call.1} parent=0 // pred_fallthru
    _

</llo_original>
